<compile_context>
chip_gen: v7x
topology: tpu7x:2x2x1
jax: 0.10.0
libtpu: 0.0.40
codegen_flags: <defaults>
</compile_context>

<pallas_src>
import jax
import jax.numpy as jnp
from jax.experimental import pallas as pl
from jax.experimental.pallas import tpu as pltpu


def _round_up(x, m):
    return (x + m - 1) // m * m


# ----------------------------------------------------------------------------
# Fused forward kernel
# ----------------------------------------------------------------------------
def make_fused_kernel(B, S, clip_dim, hidden, dim_z, vocab_pad, slab_w, flat_pad):
    inv_s = 1.0 / float(S)

    def kernel(tok_ref,   # VMEM (B, S) int32 token ids
               emb_ref,   # VMEM (vocab_pad, clip_dim) f32 clip-embedding stub table
               w1_ref,    # VMEM (clip_dim, 2*hidden) bf16   [w1_mu | w1_ls]
               b1_ref,    # VMEM (1, 2*hidden) f32
               w2_ref,    # VMEM (2*hidden, 2*dim_z) bf16    block-diag(w2_mu, w2_ls)
               b2_ref,    # VMEM (1, 2*dim_z) f32
               wg_ref,    # VMEM (dim_z, flat_pad) bf16      zero-padded GAN weight
               bg_ref,    # VMEM (1, flat_pad) f32
               eps_ref,   # VMEM (B, dim_z) f32
               slab_ref,  # VMEM out (B, slab_w) f32: [z_t | mu | sigma | pad (unwritten)]
               img_ref):  # VMEM out (B, flat_pad) f32
        # ---- clip text-encoder stub: one-hot/count gather + mean pool on the MXU ----
        # TODO(synk): clip_model.encode_text is an external pretrained CLIP
        # transformer; stubbed as embedding lookup + mean pool.
        tok = tok_ref[...]                                              # (B, S) i32
        iota_v = jax.lax.broadcasted_iota(jnp.int32, (B, vocab_pad), 1)
        counts = jnp.zeros((B, vocab_pad), jnp.float32)
        for s in range(S):                                              # static unroll, S tiny
            counts = counts + (tok[:, s:s + 1] == iota_v).astype(jnp.float32)
        counts = counts * inv_s                    # mean-pool 1/S folded into the counts
        # f32 MXU matmul keeps the gather bit-exact vs a scalar row gather; token ids
        # outside [0, vocab) match no iota column -> zero contribution (bounds-safe).
        z_t = jnp.dot(counts, emb_ref[...],
                      preferred_element_type=jnp.float32)               # (B, clip_dim) f32

        # ---- merged mu / log_sigma mapper MLPs (2 matmuls instead of 4) -------------
        h = jnp.dot(z_t.astype(jnp.bfloat16), w1_ref[...],
                    preferred_element_type=jnp.float32) + b1_ref[...]
        h = jnp.maximum(h, 0.0)                                         # (B, 2*hidden) f32
        out2 = jnp.dot(h.astype(jnp.bfloat16), w2_ref[...],
                       preferred_element_type=jnp.float32) + b2_ref[...]
        mu = out2[:, :dim_z]
        sigma = jnp.exp(out2[:, dim_z:2 * dim_z])                       # f32 (EUP)
        z_tilde = mu + sigma * eps_ref[...]

        # ---- GAN generator stub: linear + tanh, lane-padded output ------------------
        # TODO(synk): gan_model is an external pretrained generator; stubbed as a
        # linear+tanh projection.
        img_ref[...] = jnp.tanh(
            jnp.dot(z_tilde.astype(jnp.bfloat16), wg_ref[...],
                    preferred_element_type=jnp.float32) + bg_ref[...])

        # ---- three static sub-slice stores (no concat / zeros materialization) ------
        # invariant: the JAX glue only reads lanes [0, clip_dim + 2*dim_z); pad lanes
        # are left unwritten on purpose.
        slab_ref[:, :clip_dim] = z_t
        slab_ref[:, clip_dim:clip_dim + dim_z] = mu
        slab_ref[:, clip_dim + dim_z:clip_dim + 2 * dim_z] = sigma

    return kernel


# ----------------------------------------------------------------------------
# Host-side weight fusion / padding — run ONCE at init, never per forward call
# ----------------------------------------------------------------------------
def prepare_fused_params(params, vocab_pad, flat_pad):
    mu, ls = params["mu"], params["ls"]
    hidden = mu["w1"].shape[1]
    dim_z = mu["w2"].shape[1]
    vocab = params["clip_embed"].shape[0]

    emb = jnp.pad(params["clip_embed"], ((0, vocab_pad - vocab), (0, 0)))  # f32

    w1 = jnp.concatenate([mu["w1"], ls["w1"]], axis=1).astype(jnp.bfloat16)
    b1 = jnp.concatenate([mu["b1"], ls["b1"]], axis=1)

    w2 = jnp.zeros((2 * hidden, 2 * dim_z), jnp.float32)
    w2 = w2.at[:hidden, :dim_z].set(mu["w2"])
    w2 = w2.at[hidden:, dim_z:].set(ls["w2"]).astype(jnp.bfloat16)
    b2 = jnp.concatenate([mu["b2"], ls["b2"]], axis=1)

    flat = params["gan_w"].shape[1]
    wg = jnp.pad(params["gan_w"], ((0, 0), (0, flat_pad - flat))).astype(jnp.bfloat16)
    bg = jnp.pad(params["gan_b"], ((0, 0), (0, flat_pad - flat)))
    return {"emb": emb, "w1": w1, "b1": b1, "w2": w2, "b2": b2, "wg": wg, "bg": bg}


# ----------------------------------------------------------------------------
# Build the jitted XModel.forward equivalent (single Pallas launch + cheap glue)
# ----------------------------------------------------------------------------
def build_forward(B, S, clip_dim, hidden, dim_z, vocab_pad, channels, image_size):
    flat = channels * image_size * image_size
    flat_pad = _round_up(flat, 128)
    slab_w = _round_up(clip_dim + 2 * dim_z, 128)

    kernel = make_fused_kernel(B, S, clip_dim, hidden, dim_z, vocab_pad, slab_w, flat_pad)
    vmem = pl.BlockSpec(memory_space=pltpu.MemorySpace.VMEM)

    @jax.jit
    def forward(tokenized_prompts, fused, eps):
        # Gridless single program: B=2 is toy.  Once B is non-toy, add a batch grid
        # with dimension_semantics=("parallel",) to shard across v7x's 2 TensorCores,
        # keeping weight index_maps constant so weights stay VMEM-resident.  If real
        # CLIP/GAN weights replace the stubs, switch the embedding table / GAN weight
        # to memory_space=pl.ANY with a DMA row-gather + tiled double-buffered matmul.
        slab, img_pad = pl.pallas_call(
            kernel,
            out_shape=(jax.ShapeDtypeStruct((B, slab_w), jnp.float32),
                       jax.ShapeDtypeStruct((B, flat_pad), jnp.float32)),
            in_specs=[vmem] * 9,
            out_specs=(vmem, vmem),
        )(tokenized_prompts,
          fused["emb"], fused["w1"], fused["b1"], fused["w2"], fused["b2"],
          fused["wg"], fused["bg"], eps)

        z_t = slab[:, :clip_dim]
        z_mu = slab[:, clip_dim:clip_dim + dim_z]
        z_sigma = slab[:, clip_dim + dim_z:clip_dim + 2 * dim_z]
        images = img_pad[:, :flat].reshape(B, channels, image_size, image_size)
        return images, z_t, z_mu, z_sigma

    return forward


def init_params(key, vocab, clip_dim, hidden, dim_z, channels, image_size):
    ks = jax.random.split(key, 12)

    def lin(kw, kb, fan_in, fan_out):
        w = jax.random.normal(kw, (fan_in, fan_out), jnp.float32) * (1.0 / jnp.sqrt(fan_in))
        b = jax.random.normal(kb, (1, fan_out), jnp.float32) * 0.01
        return w, b

    w1m, b1m = lin(ks[0], ks[1], clip_dim, hidden)
    w2m, b2m = lin(ks[2], ks[3], hidden, dim_z)
    w1s, b1s = lin(ks[4], ks[5], clip_dim, hidden)
    w2s, b2s = lin(ks[6], ks[7], hidden, dim_z)
    gan_w, gan_b = lin(ks[8], ks[9], dim_z, channels * image_size * image_size)
    clip_embed = jax.random.normal(ks[10], (vocab, clip_dim), jnp.float32) * 0.02

    return {
        "mu": {"w1": w1m, "b1": b1m, "w2": w2m, "b2": b2m},
        "ls": {"w1": w1s, "b1": b1s, "w2": w2s, "b2": b2s},
        "gan_w": gan_w, "gan_b": gan_b,
        "clip_embed": clip_embed,
        "channels": channels, "image_size": image_size,
    }


if __name__ == "__main__":
    B, S = 2, 8           # batch, token sequence length
    VOCAB = 100
    CLIP_DIM = 64         # clip_model.visual.output_dim
    HIDDEN = 32           # args.hidden_size
    DIM_Z = 16            # gan_model.dim_z
    CHANNELS, IMG = 3, 8  # synthetic GAN output size

    VOCAB_PAD = _round_up(VOCAB, 128)
    FLAT_PAD = _round_up(CHANNELS * IMG * IMG, 128)

    key = jax.random.PRNGKey(0)
    k_params, k_tok, k_eps = jax.random.split(key, 3)

    params = init_params(k_params, VOCAB, CLIP_DIM, HIDDEN, DIM_Z, CHANNELS, IMG)
    # Weight fusion/padding hoisted out of the forward: done exactly once here.
    fused = prepare_fused_params(params, VOCAB_PAD, FLAT_PAD)
    forward = build_forward(B, S, CLIP_DIM, HIDDEN, DIM_Z, VOCAB_PAD, CHANNELS, IMG)

    tokenized_prompts = jax.random.randint(k_tok, (B, S), 0, VOCAB, dtype=jnp.int32)
    # torch.randn(z_mu.shape) -> deterministic eps here so the run is reproducible
    eps = jax.random.normal(k_eps, (B, DIM_Z), jnp.float32)

    images, z_t, z_mu, z_sigma = forward(tokenized_prompts, fused, eps)
    jax.block_until_ready((images, z_t, z_mu, z_sigma))

    assert images.shape == (B, CHANNELS, IMG, IMG)
    assert z_t.shape == (B, CLIP_DIM)
    assert z_mu.shape == (B, DIM_Z)
    assert z_sigma.shape == (B, DIM_Z)
    assert bool(jnp.all(z_sigma > 0))

    print("KERNEL_OK")
</pallas_src>

<mosaic_0001>
module attributes {stable_mosaic.version = 11 : i64} {
  func.func @kernel(%arg0: memref<2x8xi32, #tpu.memory_space<vmem>>, %arg1: memref<128x64xf32, #tpu.memory_space<vmem>>, %arg2: memref<64x64xbf16, #tpu.memory_space<vmem>>, %arg3: memref<1x64xf32, #tpu.memory_space<vmem>>, %arg4: memref<64x32xbf16, #tpu.memory_space<vmem>>, %arg5: memref<1x32xf32, #tpu.memory_space<vmem>>, %arg6: memref<16x256xbf16, #tpu.memory_space<vmem>>, %arg7: memref<1x256xf32, #tpu.memory_space<vmem>>, %arg8: memref<2x16xf32, #tpu.memory_space<vmem>>, %arg9: memref<2x128xf32, #tpu.memory_space<vmem>>, %arg10: memref<2x256xf32, #tpu.memory_space<vmem>>) attributes {dimension_semantics = [], scalar_prefetch = 0 : i64, scratch_operands = 0 : i64, tpu.core_type = #tpu.core_type<tc>} {
    %c0 = arith.constant 0 : index
    %c0_0 = arith.constant 0 : index
    %0 = vector.load %arg0[%c0, %c0_0] : memref<2x8xi32, #tpu.memory_space<vmem>>, vector<2x8xi32>
    %1 = tpu.iota {dimensions = array<i32: 1>} : vector<2x128xi32>
    %cst = arith.constant 0.000000e+00 : f32
    %2 = vector.broadcast %cst : f32 to vector<2x128xf32>
    %3 = vector.extract_strided_slice %0 {offsets = [0, 0], sizes = [2, 1], strides = [1, 1]} : vector<2x8xi32> to vector<2x1xi32>
    %4 = vector.broadcast %3 : vector<2x1xi32> to vector<2x128xi32>
    %5 = arith.cmpi eq, %4, %1 : vector<2x128xi32>
    %6 = arith.extui %5 : vector<2x128xi1> to vector<2x128xi32>
    %7 = arith.sitofp %6 : vector<2x128xi32> to vector<2x128xf32>
    %8 = arith.addf %2, %7 : vector<2x128xf32>
    %9 = vector.extract_strided_slice %0 {offsets = [0, 1], sizes = [2, 1], strides = [1, 1]} : vector<2x8xi32> to vector<2x1xi32>
    %10 = vector.broadcast %9 : vector<2x1xi32> to vector<2x128xi32>
    %11 = arith.cmpi eq, %10, %1 : vector<2x128xi32>
    %12 = arith.extui %11 : vector<2x128xi1> to vector<2x128xi32>
    %13 = arith.sitofp %12 : vector<2x128xi32> to vector<2x128xf32>
    %14 = arith.addf %8, %13 : vector<2x128xf32>
    %15 = vector.extract_strided_slice %0 {offsets = [0, 2], sizes = [2, 1], strides = [1, 1]} : vector<2x8xi32> to vector<2x1xi32>
    %16 = vector.broadcast %15 : vector<2x1xi32> to vector<2x128xi32>
    %17 = arith.cmpi eq, %16, %1 : vector<2x128xi32>
    %18 = arith.extui %17 : vector<2x128xi1> to vector<2x128xi32>
    %19 = arith.sitofp %18 : vector<2x128xi32> to vector<2x128xf32>
    %20 = arith.addf %14, %19 : vector<2x128xf32>
    %21 = vector.extract_strided_slice %0 {offsets = [0, 3], sizes = [2, 1], strides = [1, 1]} : vector<2x8xi32> to vector<2x1xi32>
    %22 = vector.broadcast %21 : vector<2x1xi32> to vector<2x128xi32>
    %23 = arith.cmpi eq, %22, %1 : vector<2x128xi32>
    %24 = arith.extui %23 : vector<2x128xi1> to vector<2x128xi32>
    %25 = arith.sitofp %24 : vector<2x128xi32> to vector<2x128xf32>
    %26 = arith.addf %20, %25 : vector<2x128xf32>
    %27 = vector.extract_strided_slice %0 {offsets = [0, 4], sizes = [2, 1], strides = [1, 1]} : vector<2x8xi32> to vector<2x1xi32>
    %28 = vector.broadcast %27 : vector<2x1xi32> to vector<2x128xi32>
    %29 = arith.cmpi eq, %28, %1 : vector<2x128xi32>
    %30 = arith.extui %29 : vector<2x128xi1> to vector<2x128xi32>
    %31 = arith.sitofp %30 : vector<2x128xi32> to vector<2x128xf32>
    %32 = arith.addf %26, %31 : vector<2x128xf32>
    %33 = vector.extract_strided_slice %0 {offsets = [0, 5], sizes = [2, 1], strides = [1, 1]} : vector<2x8xi32> to vector<2x1xi32>
    %34 = vector.broadcast %33 : vector<2x1xi32> to vector<2x128xi32>
    %35 = arith.cmpi eq, %34, %1 : vector<2x128xi32>
    %36 = arith.extui %35 : vector<2x128xi1> to vector<2x128xi32>
    %37 = arith.sitofp %36 : vector<2x128xi32> to vector<2x128xf32>
    %38 = arith.addf %32, %37 : vector<2x128xf32>
    %39 = vector.extract_strided_slice %0 {offsets = [0, 6], sizes = [2, 1], strides = [1, 1]} : vector<2x8xi32> to vector<2x1xi32>
    %40 = vector.broadcast %39 : vector<2x1xi32> to vector<2x128xi32>
    %41 = arith.cmpi eq, %40, %1 : vector<2x128xi32>
    %42 = arith.extui %41 : vector<2x128xi1> to vector<2x128xi32>
    %43 = arith.sitofp %42 : vector<2x128xi32> to vector<2x128xf32>
    %44 = arith.addf %38, %43 : vector<2x128xf32>
    %45 = vector.extract_strided_slice %0 {offsets = [0, 7], sizes = [2, 1], strides = [1, 1]} : vector<2x8xi32> to vector<2x1xi32>
    %46 = vector.broadcast %45 : vector<2x1xi32> to vector<2x128xi32>
    %47 = arith.cmpi eq, %46, %1 : vector<2x128xi32>
    %48 = arith.extui %47 : vector<2x128xi1> to vector<2x128xi32>
    %49 = arith.sitofp %48 : vector<2x128xi32> to vector<2x128xf32>
    %50 = arith.addf %44, %49 : vector<2x128xf32>
    %cst_1 = arith.constant 1.250000e-01 : f32
    %51 = vector.broadcast %cst_1 : f32 to vector<2x128xf32>
    %52 = arith.mulf %50, %51 : vector<2x128xf32>
    %c0_2 = arith.constant 0 : index
    %c0_3 = arith.constant 0 : index
    %53 = vector.load %arg1[%c0_2, %c0_3] : memref<128x64xf32, #tpu.memory_space<vmem>>, vector<128x64xf32>
    %cst_4 = arith.constant dense<0.000000e+00> : vector<2x64xf32>
    %54 = tpu.matmul %52, %53, %cst_4 {dimension_numbers = #tpu.dot_dimension_numbers<[1], [0], [0], [1], [0, 0, 1, 1], [], []>} : vector<2x128xf32>, vector<128x64xf32>, vector<2x64xf32> -> vector<2x64xf32>
    %55 = arith.truncf %54 : vector<2x64xf32> to vector<2x64xbf16>
    %c0_5 = arith.constant 0 : index
    %c0_6 = arith.constant 0 : index
    %56 = vector.load %arg2[%c0_5, %c0_6] : memref<64x64xbf16, #tpu.memory_space<vmem>>, vector<64x64xbf16>
    %cst_7 = arith.constant dense<0.000000e+00> : vector<2x64xf32>
    %57 = tpu.matmul %55, %56, %cst_7 {dimension_numbers = #tpu.dot_dimension_numbers<[1], [0], [0], [1], [0, 0, 1, 1], [], []>} : vector<2x64xbf16>, vector<64x64xbf16>, vector<2x64xf32> -> vector<2x64xf32>
    %c0_8 = arith.constant 0 : index
    %c0_9 = arith.constant 0 : index
    %58 = vector.load %arg3[%c0_8, %c0_9] : memref<1x64xf32, #tpu.memory_space<vmem>>, vector<1x64xf32>
    %59 = vector.broadcast %58 : vector<1x64xf32> to vector<2x64xf32>
    %60 = arith.addf %57, %59 : vector<2x64xf32>
    %cst_10 = arith.constant 0.000000e+00 : f32
    %61 = vector.broadcast %cst_10 : f32 to vector<2x64xf32>
    %62 = arith.maximumf %60, %61 : vector<2x64xf32>
    %63 = arith.truncf %62 : vector<2x64xf32> to vector<2x64xbf16>
    %c0_11 = arith.constant 0 : index
    %c0_12 = arith.constant 0 : index
    %64 = vector.load %arg4[%c0_11, %c0_12] : memref<64x32xbf16, #tpu.memory_space<vmem>>, vector<64x32xbf16>
    %cst_13 = arith.constant dense<0.000000e+00> : vector<2x32xf32>
    %65 = tpu.matmul %63, %64, %cst_13 {dimension_numbers = #tpu.dot_dimension_numbers<[1], [0], [0], [1], [0, 0, 1, 1], [], []>} : vector<2x64xbf16>, vector<64x32xbf16>, vector<2x32xf32> -> vector<2x32xf32>
    %c0_14 = arith.constant 0 : index
    %c0_15 = arith.constant 0 : index
    %66 = vector.load %arg5[%c0_14, %c0_15] : memref<1x32xf32, #tpu.memory_space<vmem>>, vector<1x32xf32>
    %67 = vector.broadcast %66 : vector<1x32xf32> to vector<2x32xf32>
    %68 = arith.addf %65, %67 : vector<2x32xf32>
    %69 = vector.extract_strided_slice %68 {offsets = [0, 0], sizes = [2, 16], strides = [1, 1]} : vector<2x32xf32> to vector<2x16xf32>
    %70 = vector.extract_strided_slice %68 {offsets = [0, 16], sizes = [2, 16], strides = [1, 1]} : vector<2x32xf32> to vector<2x16xf32>
    %71 = math.exp %70 : vector<2x16xf32>
    %c0_16 = arith.constant 0 : index
    %c0_17 = arith.constant 0 : index
    %72 = vector.load %arg8[%c0_16, %c0_17] : memref<2x16xf32, #tpu.memory_space<vmem>>, vector<2x16xf32>
    %73 = arith.mulf %71, %72 : vector<2x16xf32>
    %74 = arith.addf %69, %73 : vector<2x16xf32>
    %75 = arith.truncf %74 : vector<2x16xf32> to vector<2x16xbf16>
    %c0_18 = arith.constant 0 : index
    %c0_19 = arith.constant 0 : index
    %76 = vector.load %arg6[%c0_18, %c0_19] : memref<16x256xbf16, #tpu.memory_space<vmem>>, vector<16x256xbf16>
    %cst_20 = arith.constant dense<0.000000e+00> : vector<2x256xf32>
    %77 = tpu.matmul %75, %76, %cst_20 {dimension_numbers = #tpu.dot_dimension_numbers<[1], [0], [0], [1], [0, 0, 1, 1], [], []>} : vector<2x16xbf16>, vector<16x256xbf16>, vector<2x256xf32> -> vector<2x256xf32>
    %c0_21 = arith.constant 0 : index
    %c0_22 = arith.constant 0 : index
    %78 = vector.load %arg7[%c0_21, %c0_22] : memref<1x256xf32, #tpu.memory_space<vmem>>, vector<1x256xf32>
    %79 = vector.broadcast %78 : vector<1x256xf32> to vector<2x256xf32>
    %80 = arith.addf %77, %79 : vector<2x256xf32>
    %81 = math.tanh %80 : vector<2x256xf32>
    %c0_23 = arith.constant 0 : index
    %c0_24 = arith.constant 0 : index
    %82 = vector.load %arg10[%c0_23, %c0_24] : memref<2x256xf32, #tpu.memory_space<vmem>>, vector<2x256xf32>
    tpu.vector_store %arg10[%c0_23, %c0_24], %81 {strides = array<i32>} : memref<2x256xf32, #tpu.memory_space<vmem>>, vector<2x256xf32>,
    %c0_25 = arith.constant 0 : index
    %c0_26 = arith.constant 0 : index
    %83 = vector.load %arg9[%c0_25, %c0_26] : memref<2x128xf32, #tpu.memory_space<vmem>>, vector<2x64xf32>
    tpu.vector_store %arg9[%c0_25, %c0_26], %54 {strides = array<i32>} : memref<2x128xf32, #tpu.memory_space<vmem>>, vector<2x64xf32>,
    %c0_27 = arith.constant 0 : index
    %c64 = arith.constant 64 : index
    %84 = vector.load %arg9[%c0_27, %c64] : memref<2x128xf32, #tpu.memory_space<vmem>>, vector<2x16xf32>
    tpu.vector_store %arg9[%c0_27, %c64], %69 {strides = array<i32>} : memref<2x128xf32, #tpu.memory_space<vmem>>, vector<2x16xf32>,
    %c0_28 = arith.constant 0 : index
    %c80 = arith.constant 80 : index
    %85 = vector.load %arg9[%c0_28, %c80] : memref<2x128xf32, #tpu.memory_space<vmem>>, vector<2x16xf32>
    tpu.vector_store %arg9[%c0_28, %c80], %71 {strides = array<i32>} : memref<2x128xf32, #tpu.memory_space<vmem>>, vector<2x16xf32>,
    return
  }
}

</mosaic_0001>

<llo_original>
// kernel: forward.1
$region0: #{forward.1}
  #allocation0 [shape = 'u32[]', space=smem, size = 0x4, offset = 0x4, fixed_abs, tag = 'smem constant byte address 0x4 - core index']
  #allocation1 [shape = 'u32[144,128]{1,0:T(1,128)}', space=vmem, size = 0x12000, scoped, tag = 'internal scratch']
  %s0 = inlined_call_operand.vmem [shape: s32[2,8], index: 0, kind: input, shape index: {}]
  %s1 = inlined_call_operand.vmem [shape: f32[128,64], index: 1, kind: input, shape index: {}]
  %s2 = inlined_call_operand.vmem [shape: bf16[64,64], index: 2, kind: input, shape index: {}]
  %s3 = inlined_call_operand.vmem [shape: f32[1,64], index: 3, kind: input, shape index: {}]
  %s4 = inlined_call_operand.vmem [shape: bf16[64,32], index: 4, kind: input, shape index: {}]
  %s5 = inlined_call_operand.vmem [shape: f32[1,32], index: 5, kind: input, shape index: {}]
  %s6 = inlined_call_operand.vmem [shape: bf16[16,256], index: 6, kind: input, shape index: {}]
  %s7 = inlined_call_operand.vmem [shape: f32[1,256], index: 7, kind: input, shape index: {}]
  %s8 = inlined_call_operand.vmem [shape: f32[2,16], index: 8, kind: input, shape index: {}]
  %s9 = inlined_call_operand.vmem [shape: f32[2,128], index: 9, kind: output, shape index: {0}]
  %s10 = inlined_call_operand.vmem [shape: f32[2,256], index: 10, kind: output, shape index: {1}]
  %11 = xla_tuple %s9, %s10
  %s12 = sld [smem:[#allocation0]]
  $region54: #{forward.1} parent=0
    _
  %s14 = ssub.s32 1, %s12
  %s15 = scalar_select 0, %s14, %s12
  // Predicated region
  $region2: #{forward.1} parent=0 // pred_check
    _
  $region3: #{forward.1} parent=0 // pred_check_branch
    %17 = sbr.rel (0) target = $region5
  $region4: #{forward.1} parent=0 // pred_region
    _
  $region5: #{forward.1} parent=0 // pred_fallthru
    _
  // Predicated region
  $region6: #{forward.1} parent=0 // pred_check
    _
  $region7: #{forward.1} parent=0 // pred_check_branch
    %19 = sbr.rel (0) target = $region9
  $region8: #{forward.1} parent=0 // pred_region
    _
  $region9: #{forward.1} parent=0 // pred_fallthru
    _
  // Predicated region
  $region10: #{forward.1} parent=0 // pred_check
    _
  $region11: #{forward.1} parent=0 // pred_check_branch
    %21 = sbr.rel (0) target = $region13
  $region12: #{forward.1} parent=0 // pred_region
    _
  $region13: #{forward.1} parent=0 // pred_fallthru
    _
  // Predicated region
  $region14: #{forward.1} parent=0 // pred_check
    _
  $region15: #{forward.1} parent=0 // pred_check_branch
    %23 = sbr.rel (0) target = $region17
  $region16: #{forward.1} parent=0 // pred_region
    _
  $region17: #{forward.1} parent=0 // pred_fallthru
    _
  // Predicated region
  $region18: #{forward.1} parent=0 // pred_check
    _
  $region19: #{forward.1} parent=0 // pred_check_branch
    %25 = sbr.rel (0) target = $region21
  $region20: #{forward.1} parent=0 // pred_region
    _
  $region21: #{forward.1} parent=0 // pred_fallthru
    _
  // Predicated region
  $region22: #{forward.1} parent=0 // pred_check
    _
  $region23: #{forward.1} parent=0 // pred_check_branch
    %27 = sbr.rel (0) target = $region25
  $region24: #{forward.1} parent=0 // pred_region
    _
  $region25: #{forward.1} parent=0 // pred_fallthru
    _
  // Predicated region
  $region26: #{forward.1} parent=0 // pred_check
    _
  $region27: #{forward.1} parent=0 // pred_check_branch
    %29 = sbr.rel (0) target = $region29
  $region28: #{forward.1} parent=0 // pred_region
    _
  $region29: #{forward.1} parent=0 // pred_fallthru
    _
  // Predicated region
  $region30: #{forward.1} parent=0 // pred_check
    _
  $region31: #{forward.1} parent=0 // pred_check_branch
    %31 = sbr.rel (0) target = $region33
  $region32: #{forward.1} parent=0 // pred_region
    _
  $region33: #{forward.1} parent=0 // pred_fallthru
    _
  // Predicated region
  $region34: #{forward.1} parent=0 // pred_check
    _
  $region35: #{forward.1} parent=0 // pred_check_branch
    %33 = sbr.rel (0) target = $region37
  $region36: #{forward.1} parent=0 // pred_region
    _
  $region37: #{forward.1} parent=0 // pred_fallthru
    _
  %v35 = vld [vmem:[%s0] sm:$0x3]
  %v36 = vlaneseq
  %v37 = vand.u32 %v36, 127
  %38 = vset.pattern.permute.xlu0 0
  %39 = vperm.xlu0 %38, %v35
  %v40 = vpop.permute.xlu0 %39
  %vm41 = vcmp.eq.s32.totalorder %v40, %v37
  %v42 = vsel %vm41, 1, 0
  %v43 = vcvt.s32.f32 %v42
  %v44 = vadd.f32 %v43, 0.0
  %45 = vset.pattern.permute.xlu0 1
  %46 = vperm.xlu0 %45, %v35
  %v47 = vpop.permute.xlu0 %46
  %vm48 = vcmp.eq.s32.totalorder %v47, %v37
  %v49 = vsel %vm48, 1, 0
  %v50 = vcvt.s32.f32 %v49
  %v51 = vadd.f32 %v44, %v50
  %52 = vset.pattern.permute.xlu0 2
  %53 = vperm.xlu0 %52, %v35
  %v54 = vpop.permute.xlu0 %53
  %vm55 = vcmp.eq.s32.totalorder %v54, %v37
  %v56 = vsel %vm55, 1, 0
  %v57 = vcvt.s32.f32 %v56
  %v58 = vadd.f32 %v51, %v57
  %59 = vset.pattern.permute.xlu0 3
  %60 = vperm.xlu0 %59, %v35
  %v61 = vpop.permute.xlu0 %60
  %vm62 = vcmp.eq.s32.totalorder %v61, %v37
  %v63 = vsel %vm62, 1, 0
  %v64 = vcvt.s32.f32 %v63
  %v65 = vadd.f32 %v58, %v64
  %66 = vset.pattern.permute.xlu0 4
  %67 = vperm.xlu0 %66, %v35
  %v68 = vpop.permute.xlu0 %67
  %vm69 = vcmp.eq.s32.totalorder %v68, %v37
  %v70 = vsel %vm69, 1, 0
  %v71 = vcvt.s32.f32 %v70
  %v72 = vadd.f32 %v65, %v71
  %73 = vset.pattern.permute.xlu0 5
  %74 = vperm.xlu0 %73, %v35
  %v75 = vpop.permute.xlu0 %74
  %vm76 = vcmp.eq.s32.totalorder %v75, %v37
  %v77 = vsel %vm76, 1, 0
  %v78 = vcvt.s32.f32 %v77
  %v79 = vadd.f32 %v72, %v78
  %80 = vset.pattern.permute.xlu0 6
  %81 = vperm.xlu0 %80, %v35
  %v82 = vpop.permute.xlu0 %81
  %vm83 = vcmp.eq.s32.totalorder %v82, %v37
  %v84 = vsel %vm83, 1, 0
  %v85 = vcvt.s32.f32 %v84
  %v86 = vadd.f32 %v79, %v85
  %87 = vset.pattern.permute.xlu0 7
  %88 = vperm.xlu0 %87, %v35
  %v89 = vpop.permute.xlu0 %88
  %vm90 = vcmp.eq.s32.totalorder %v89, %v37
  %v91 = vsel %vm90, 1, 0
  %v92 = vcvt.s32.f32 %v91
  %v93 = vadd.f32 %v86, %v92
  %v94 = vmul.f32 %v93, 0.125
  %v95 = vld [vmem:[%s1] sm:$0xff]
  %v96 = vld [vmem:[%s1 + $0x8] sm:$0xff]
  %v97 = vld [vmem:[%s1 + $0x10] sm:$0xff]
  %v98 = vld [vmem:[%s1 + $0x18] sm:$0xff]
  %v99 = vld [vmem:[%s1 + $0x20] sm:$0xff]
  %v100 = vld [vmem:[%s1 + $0x28] sm:$0xff]
  %v101 = vld [vmem:[%s1 + $0x30] sm:$0xff]
  %v102 = vld [vmem:[%s1 + $0x38] sm:$0xff]
  %v103 = vld [vmem:[%s1 + $0x40] sm:$0xff]
  %v104 = vld [vmem:[%s1 + $0x48] sm:$0xff]
  %v105 = vld [vmem:[%s1 + $0x50] sm:$0xff]
  %v106 = vld [vmem:[%s1 + $0x58] sm:$0xff]
  %v107 = vld [vmem:[%s1 + $0x60] sm:$0xff]
  %v108 = vld [vmem:[%s1 + $0x68] sm:$0xff]
  %v109 = vld [vmem:[%s1 + $0x70] sm:$0xff]
  %v110 = vld [vmem:[%s1 + $0x78] sm:$0xff]
  %111 = vmatprep.subr.mxu0 0.0
  %112 = vmatpush1.msra.mxu0 %v95
  %113 = vmatprep.subr.mxu0 0.0
  %114 = vmatpush1.msra.mxu0 %v96
  %115 = vmatprep.subr.mxu0 0.0
  %116 = vmatpush1.msra.mxu0 %v97
  %117 = vmatprep.subr.mxu0 0.0
  %118 = vmatpush1.msra.mxu0 %v98
  %119 = vmatprep.subr.mxu0 0.0
  %120 = vmatpush1.msra.mxu0 %v99
  %121 = vmatprep.subr.mxu0 0.0
  %122 = vmatpush1.msra.mxu0 %v100
  %123 = vmatprep.subr.mxu0 0.0
  %124 = vmatpush1.msra.mxu0 %v101
  %125 = vmatprep.subr.mxu0 0.0
  %126 = vmatpush1.msra.mxu0 %v102
  %127 = vmatprep.subr.mxu0 0.0
  %128 = vmatpush1.msra.mxu0 %v103
  %129 = vmatprep.subr.mxu0 0.0
  %130 = vmatpush1.msra.mxu0 %v104
  %131 = vmatprep.subr.mxu0 0.0
  %132 = vmatpush1.msra.mxu0 %v105
  %133 = vmatprep.subr.mxu0 0.0
  %134 = vmatpush1.msra.mxu0 %v106
  %135 = vmatprep.subr.mxu0 0.0
  %136 = vmatpush1.msra.mxu0 %v107
  %137 = vmatprep.subr.mxu0 0.0
  %138 = vmatpush1.msra.mxu0 %v108
  %139 = vmatprep.subr.mxu0 0.0
  %140 = vmatpush1.msra.mxu0 %v109
  %141 = vmatprep.subr.mxu0 0.0
  %142 = vmatpush1.msra.mxu0 %v110
  %143 = vmatprep.subr.mxu0 0.0
  %144 = vmatpush1.msra.mxu0 0.0
  %145 = vmatprep.subr.mxu0 0.0
  %146 = vmatpush1.msra.mxu0 0.0
  %147 = vmatprep.subr.mxu0 0.0
  %148 = vmatpush1.msra.mxu0 0.0
  %149 = vmatprep.subr.mxu0 0.0
  %150 = vmatpush1.msra.mxu0 0.0
  %151 = vmatprep.subr.mxu0 0.0
  %152 = vmatpush1.msra.mxu0 0.0
  %153 = vmatprep.subr.mxu0 0.0
  %154 = vmatpush1.msra.mxu0 0.0
  %155 = vmatprep.subr.mxu0 0.0
  %156 = vmatpush1.msra.mxu0 0.0
  %157 = vmatprep.subr.mxu0 0.0
  %158 = vmatpush1.msra.mxu0 0.0
  %159 = vmatprep.subr.mxu0 0.0
  %160 = vmatpush1.msra.mxu0 0.0
  %161 = vmatprep.subr.mxu0 0.0
  %162 = vmatpush1.msra.mxu0 0.0
  %163 = vmatprep.subr.mxu0 0.0
  %164 = vmatpush1.msra.mxu0 0.0
  %165 = vmatprep.subr.mxu0 0.0
  %166 = vmatpush1.msra.mxu0 0.0
  %167 = vmatprep.subr.mxu0 0.0
  %168 = vmatpush1.msra.mxu0 0.0
  %169 = vmatprep.subr.mxu0 0.0
  %170 = vmatpush1.msra.mxu0 0.0
  %171 = vmatprep.subr.mxu0 0.0
  %172 = vmatpush1.msra.mxu0 0.0
  %173 = vmatprep.subr.mxu0 0.0
  %174 = vmatpush1.msra.mxu0 0.0
  %175 = vmatprep.mubr.f32.mxu0 0.0
  %176 = vmatmul.mubr.f32.gmra.mrb[0].mxu0 %v94
  %v177 = vpop.f32.mrb[0].mxu0
  %v178 = vadd.f32 0.0, %v177
  %v179 = vpop.f32.mrb[0].mxu0
  %180 = vdwg.mxu0
  %v181 = vpack.c.bf16 %v178, %v178
  %v182 = vld [vmem:[%s2] sm:$0xf]
  %v183 = vld [vmem:[%s2 + $0x4] sm:$0xf]
  %v184 = vld [vmem:[%s2 + $0x8] sm:$0xf]
  %v185 = vld [vmem:[%s2 + $0xc] sm:$0xf]
  %v186 = vld [vmem:[%s2 + $0x10] sm:$0xf]
  %v187 = vld [vmem:[%s2 + $0x14] sm:$0xf]
  %v188 = vld [vmem:[%s2 + $0x18] sm:$0xf]
  %v189 = vld [vmem:[%s2 + $0x1c] sm:$0xf]
  %v190 = vld [vmem:[%s3] sm:$0x1]
  %v192 = vlaneseq
  %v193 = vshrl.u32 %v192, 7
  %v194 = vsub.s32 0, %v193
  %v195 = vrot.slane %v190, %v194
  %v205 = vunpack.c.l.b16 %v182
  %v206 = vunpack.c.l.b16 %v183
  %v207 = vunpack.c.l.b16 %v184
  %v208 = vunpack.c.l.b16 %v185
  %v209 = vunpack.c.l.b16 %v186
  %v210 = vunpack.c.l.b16 %v187
  %v211 = vunpack.c.l.b16 %v188
  %v212 = vunpack.c.l.b16 %v189
  %v213 = vpack.c.b16 %v206, %v205
  %v214 = vpack.c.b16 %v208, %v207
  %v215 = vpack.c.b16 %v210, %v209
  %v216 = vpack.c.b16 %v212, %v211
  %vm221 = vcmask 523264
  %v223 = vsel %vm221, %v181, 0
  %225 = vmatprep.subr.bf16.mxu0 0
  %226 = vmatpush1.bf16.msra.mxu0 %v213
  %227 = vmatprep.subr.bf16.mxu0 0
  %228 = vmatpush1.bf16.msra.mxu0 %v214
  %229 = vmatprep.subr.bf16.mxu0 0
  %230 = vmatpush1.bf16.msra.mxu0 %v215
  %231 = vmatprep.subr.bf16.mxu0 0
  %232 = vmatpush1.bf16.msra.mxu0 %v216
  %233 = vmatprep.subr.bf16.mxu0 0
  %234 = vmatpush1.bf16.msra.mxu0 0
  %235 = vmatprep.subr.bf16.mxu0 0
  %236 = vmatpush1.bf16.msra.mxu0 0
  %237 = vmatprep.subr.bf16.mxu0 0
  %238 = vmatpush1.bf16.msra.mxu0 0
  %239 = vmatprep.subr.bf16.mxu0 0
  %240 = vmatpush1.bf16.msra.mxu0 0
  %241 = vmatprep.subr.bf16.mxu0 0
  %242 = vmatpush1.bf16.msra.mxu0 0
  %243 = vmatprep.subr.bf16.mxu0 0
  %244 = vmatpush1.bf16.msra.mxu0 0
  %245 = vmatprep.subr.bf16.mxu0 0
  %246 = vmatpush1.bf16.msra.mxu0 0
  %247 = vmatprep.subr.bf16.mxu0 0
  %248 = vmatpush1.bf16.msra.mxu0 0
  %249 = vmatprep.subr.bf16.mxu0 0
  %250 = vmatpush1.bf16.msra.mxu0 0
  %251 = vmatprep.subr.bf16.mxu0 0
  %252 = vmatpush1.bf16.msra.mxu0 0
  %253 = vmatprep.subr.bf16.mxu0 0
  %254 = vmatpush1.bf16.msra.mxu0 0
  %255 = vmatprep.subr.bf16.mxu0 0
  %256 = vmatpush1.bf16.msra.mxu0 0
  %257 = vmatprep.mubr.bf16.mxu0 0
  %258 = vmatmul.mubr.bf16.gmra.mrb[0].mxu0 %v223
  %v259 = vpop.f32.mrb[0].mxu0
  %v260 = vadd.f32 %v195, %v259
  %v261 = vpop.f32.mrb[0].mxu0
  %v262 = vpop.f32.mrb[0].mxu0
  %v263 = vpop.f32.mrb[0].mxu0
  %264 = vdwg.mxu0
  %v265 = vmax.f32 %v260, 0.0
  %v266 = vpack.c.bf16 %v265, %v265
  %v267 = vld [vmem:[%s4] sm:$0xf]
  %v268 = vld [vmem:[%s4 + $0x4] sm:$0xf]
  %v269 = vld [vmem:[%s4 + $0x8] sm:$0xf]
  %v270 = vld [vmem:[%s4 + $0xc] sm:$0xf]
  %v271 = vld [vmem:[%s4 + $0x10] sm:$0xf]
  %v272 = vld [vmem:[%s4 + $0x14] sm:$0xf]
  %v273 = vld [vmem:[%s4 + $0x18] sm:$0xf]
  %v274 = vld [vmem:[%s4 + $0x1c] sm:$0xf]
  %v275 = vld [vmem:[%s5] sm:$0x1]
  %v277 = vlaneseq
  %v278 = vshrl.u32 %v277, 7
  %v279 = vsub.s32 0, %v278
  %v280 = vrot.slane %v275, %v279
  %v290 = vunpack.c.l.b16 %v267
  %v291 = vunpack.c.l.b16 %v268
  %v292 = vunpack.c.l.b16 %v269
  %v293 = vunpack.c.l.b16 %v270
  %v294 = vunpack.c.l.b16 %v271
  %v295 = vunpack.c.l.b16 %v272
  %v296 = vunpack.c.l.b16 %v273
  %v297 = vunpack.c.l.b16 %v274
  %v298 = vpack.c.b16 %v291, %v290
  %v299 = vpack.c.b16 %v293, %v292
  %v300 = vpack.c.b16 %v295, %v294
  %v301 = vpack.c.b16 %v297, %v296
  %v307 = vsel %vm221, %v266, 0
  %309 = vmatprep.subr.bf16.mxu0 0
  %310 = vmatpush1.bf16.msra.mxu0 %v298
  %311 = vmatprep.subr.bf16.mxu0 0
  %312 = vmatpush1.bf16.msra.mxu0 %v299
  %313 = vmatprep.subr.bf16.mxu0 0
  %314 = vmatpush1.bf16.msra.mxu0 %v300
  %315 = vmatprep.subr.bf16.mxu0 0
  %316 = vmatpush1.bf16.msra.mxu0 %v301
  %317 = vmatprep.subr.bf16.mxu0 0
  %318 = vmatpush1.bf16.msra.mxu0 0
  %319 = vmatprep.subr.bf16.mxu0 0
  %320 = vmatpush1.bf16.msra.mxu0 0
  %321 = vmatprep.subr.bf16.mxu0 0
  %322 = vmatpush1.bf16.msra.mxu0 0
  %323 = vmatprep.subr.bf16.mxu0 0
  %324 = vmatpush1.bf16.msra.mxu0 0
  %325 = vmatprep.subr.bf16.mxu0 0
  %326 = vmatpush1.bf16.msra.mxu0 0
  %327 = vmatprep.subr.bf16.mxu0 0
  %328 = vmatpush1.bf16.msra.mxu0 0
  %329 = vmatprep.subr.bf16.mxu0 0
  %330 = vmatpush1.bf16.msra.mxu0 0
  %331 = vmatprep.subr.bf16.mxu0 0
  %332 = vmatpush1.bf16.msra.mxu0 0
  %333 = vmatprep.subr.bf16.mxu0 0
  %334 = vmatpush1.bf16.msra.mxu0 0
  %335 = vmatprep.subr.bf16.mxu0 0
  %336 = vmatpush1.bf16.msra.mxu0 0
  %337 = vmatprep.subr.bf16.mxu0 0
  %338 = vmatpush1.bf16.msra.mxu0 0
  %339 = vmatprep.subr.bf16.mxu0 0
  %340 = vmatpush1.bf16.msra.mxu0 0
  %341 = vmatprep.mubr.bf16.mxu0 0
  %342 = vmatmul.mubr.bf16.gmra.mrb[0].mxu0 %v307
  %v343 = vpop.f32.mrb[0].mxu0
  %v344 = vadd.f32 %v280, %v343
  %v345 = vpop.f32.mrb[0].mxu0
  %v346 = vpop.f32.mrb[0].mxu0
  %v347 = vpop.f32.mrb[0].mxu0
  %348 = vdwg.mxu0
  %v349 = vmul.f32 %v344, 1.442695
  %v350 = vpow.pop %v349
  %v351 = vld [vmem:[%s8] sm:$0x3]
  %353 = vrot.lane.b32.xlu0 %v351, 16
  %v354 = vpop.permute.xlu0 %353
  %v356 = vmul.f32 %v350, %v354
  %358 = vrot.lane.b32.xlu0 %v356, 112
  %v359 = vpop.permute.xlu0 %358
  %v361 = vadd.f32 %v344, %v359
  %v362 = vpack.c.bf16 %v361, %v361
  %v363 = vld [vmem:[%s6] sm:$0xff]
  %v364 = vld [vmem:[%s6 + $0x8] sm:$0xff]
  %v365 = vld [vmem:[%s7] sm:$0x3]
  %v367 = vlaneseq
  %v368 = vshrl.u32 %v367, 7
  %v369 = vsub.s32 0, %v368
  %v370 = vrot.slane %v365, %v369
  %v371 = vlaneseq
  %v372 = vshrl.u32 %v371, 7
  %v373 = vsub.s32 1, %v372
  %v374 = vrot.slane %v365, %v373
  %v379 = vunpack.c.l.b16 %v363
  %v380 = vunpack.c.h.b16 %v363
  %v381 = vunpack.c.l.b16 %v364
  %v382 = vunpack.c.h.b16 %v364
  %v383 = vpack.c.b16 %v381, %v379
  %v384 = vpack.c.b16 %v382, %v380
  %vm387 = vcmask 130048
  %v389 = vsel %vm387, %v362, 0
  %391 = vmatprep.subr.bf16.mxu0 %v384
  %392 = vmatpush1.bf16.msra.mxu0 %v383
  %393 = vmatprep.subr.bf16.mxu0 0
  %394 = vmatpush1.bf16.msra.mxu0 0
  %395 = vmatprep.subr.bf16.mxu0 0
  %396 = vmatpush1.bf16.msra.mxu0 0
  %397 = vmatprep.subr.bf16.mxu0 0
  %398 = vmatpush1.bf16.msra.mxu0 0
  %399 = vmatprep.subr.bf16.mxu0 0
  %400 = vmatpush1.bf16.msra.mxu0 0
  %401 = vmatprep.subr.bf16.mxu0 0
  %402 = vmatpush1.bf16.msra.mxu0 0
  %403 = vmatprep.subr.bf16.mxu0 0
  %404 = vmatpush1.bf16.msra.mxu0 0
  %405 = vmatprep.subr.bf16.mxu0 0
  %406 = vmatpush1.bf16.msra.mxu0 0
  %407 = vmatprep.subr.bf16.mxu0 0
  %408 = vmatpush1.bf16.msra.mxu0 0
  %409 = vmatprep.subr.bf16.mxu0 0
  %410 = vmatpush1.bf16.msra.mxu0 0
  %411 = vmatprep.subr.bf16.mxu0 0
  %412 = vmatpush1.bf16.msra.mxu0 0
  %413 = vmatprep.subr.bf16.mxu0 0
  %414 = vmatpush1.bf16.msra.mxu0 0
  %415 = vmatprep.subr.bf16.mxu0 0
  %416 = vmatpush1.bf16.msra.mxu0 0
  %417 = vmatprep.subr.bf16.mxu0 0
  %418 = vmatpush1.bf16.msra.mxu0 0
  %419 = vmatprep.subr.bf16.mxu0 0
  %420 = vmatpush1.bf16.msra.mxu0 0
  %421 = vmatprep.subr.bf16.mxu0 0
  %422 = vmatpush1.bf16.msra.mxu0 0
  %423 = vmatprep.mubr.bf16.mxu0 0
  %424 = vmatmul.mubr.bf16.gmra.mrb[0].mxu0 %v389
  %v425 = vpop.f32.mrb[0].mxu0
  %v426 = vadd.f32 %v370, %v425
  %v427 = vpop.f32.mrb[0].mxu0
  %v428 = vadd.f32 %v374, %v427
  %v429 = vpop.f32.mrb[0].mxu0
  %v430 = vpop.f32.mrb[0].mxu0
  %431 = vdwg.mxu0
  %v432 = vtanh.pop %v426
  %v433 = vtanh.pop %v428
  %v436 = vcombine.low %v432, %v433
  %v438 = vunpack.c.l.s4 1983009808
  %v439 = vunpack.c.0.s8 %v438
  %v440 = vlaneseq
  %v441 = vshrl.u32 %v440, 7
  %v442 = vsub.s32 %v439, %v441
  %v443 = vrot.slane %v436, %v442
  %445 = vst [vmem:[%s10] sm:$0xf] %v443
  %vm446 = vcmask 517120
  %447 = vst.msk [vmem:[%s9] sm:$0x3] %vm446, %v178
  %449 = vrot.lane.b32.xlu0 %v344, 64
  %v450 = vpop.permute.xlu0 %449
  %vm452 = vcmask 648704
  %453 = vst.msk [vmem:[%s9] sm:$0x3] %vm452, %v450
  %455 = vrot.lane.b32.xlu0 %v350, 64
  %v456 = vpop.permute.xlu0 %455
  %vm458 = vcmask 779904
  %459 = vst.msk [vmem:[%s9] sm:$0x3] %vm458, %v456
  // Predicated region
  $region38: #{forward.1} parent=0 // pred_check
    _
  $region39: #{forward.1} parent=0 // pred_check_branch
    %461 = sbr.rel (0) target = $region41
  $region40: #{forward.1} parent=0 // pred_region
    _
  $region41: #{forward.1} parent=0 // pred_fallthru
    _
  // Predicated region
  $region42: #{forward.1} parent=0 // pred_check
    _
  $region43: #{forward.1} parent=0 // pred_check_branch
    %463 = sbr.rel (0) target = $region45
  $region44: #{forward.1} parent=0 // pred_region
    _
  $region45: #{forward.1} parent=0 // pred_fallthru
    _
  // Predicated region
  $region46: #{forward.1} parent=0 // pred_check
    _
  $region47: #{forward.1} parent=0 // pred_check_branch
    %465 = sbr.rel (0) target = $region49
  $region48: #{forward.1} parent=0 // pred_region
    _
  $region49: #{forward.1} parent=0 // pred_fallthru
    _
  // Predicated region
  $region50: #{forward.1} parent=0 // pred_check
    _
  $region51: #{forward.1} parent=0 // pred_check_branch
    %467 = sbr.rel (0) target = $region53
  $region52: #{forward.1} parent=0 // pred_region
    _
  $region53: #{forward.1} parent=0 // pred_fallthru
    _

</llo_original>
